<compile_context>
chip_gen: v7x
topology: tpu7x:2x2x1
jax: 0.10.0
libtpu: 0.0.40
codegen_flags: <defaults>
</compile_context>

<pallas_src>
import jax
import jax.numpy as jnp
from jax.experimental import pallas as pl
from jax.experimental.pallas import tpu as pltpu

IN_FEATURES = 32 * 9 * 4   # 1152, fixed by the module (maps onto 9 lane-tiles)
MAX_NORM = 0.5
RENORM_EPS = 1e-7          # torch.renorm uses maxnorm / (norm + 1e-7)
NEG_BIG = -1e30            # bias fill for padded classes -> exp underflows to 0
LANE = 128
MAX_TB = 2048              # ~22 MiB VMEM (2x9.4 MiB x-bufs + 2 MiB out + ~1 MiB w)
VMEM_LIMIT_BYTES = 32 * 1024 * 1024


def classifier_kernel(x_ref, w_ref, b_ref, o_ref):
    """One batch tile: x @ W_t + b followed by log_softmax over classes.

    x_ref: (TB, D)      f32
    w_ref: (D, C_pad)   f32  (renormed, transposed, zero-padded columns)
    b_ref: (1, C_pad)   f32  (padded entries = NEG_BIG)
    o_ref: (TB, C_pad)  f32
    """
    # Canonical (M,K)x(K,N) MXU matmul: weight is already in (K, N) layout,
    # so no in-kernel transpose can sneak in.
    logits = jnp.dot(
        x_ref[...], w_ref[...], preferred_element_type=jnp.float32
    ) + b_ref[...]

    # Numerically stable log_softmax along dim=1. Padded columns hold ~NEG_BIG
    # (finite!), so exp(z) underflows to 0 there and they do not perturb the
    # real classes (do NOT replace NEG_BIG with -inf: inf-inf -> NaN).
    m = jnp.max(logits, axis=1, keepdims=True)
    z = logits - m
    lse = jnp.log(jnp.sum(jnp.exp(z), axis=1, keepdims=True))
    o_ref[...] = z - lse


def _preprocess_params(weight, bias):
    """Renorm (torch.renorm semantics), pad classes to 128, pre-transpose."""
    C, D = weight.shape
    norm = jnp.sqrt(jnp.sum(weight * weight, axis=1, keepdims=True))
    scale = jnp.where(norm > MAX_NORM, MAX_NORM / (norm + RENORM_EPS), 1.0)
    w = weight * scale

    C_pad = max(LANE, ((C + LANE - 1) // LANE) * LANE)
    # (D, C_pad): MXU-native (K, N) layout with lane-dense N. Padded columns
    # are zero weights + NEG_BIG bias -> contribute exp()=0 to the softmax.
    w_t = jnp.zeros((D, C_pad), jnp.float32).at[:, :C].set(w.T)
    b_pad = jnp.full((1, C_pad), NEG_BIG, jnp.float32).at[0, :C].set(bias)
    return w_t, b_pad, C_pad


def _choose_batch_tile(B):
    """Pick the batch tile TB (multiple of 8 unless TB == B)."""
    if B <= 16:
        # Single full-array block; (8,128) rule satisfied via block == array.
        return B
    if B <= 2 * MAX_TB:
        # At least 2 grid steps so the pipeline (and v7x's 2nd TC) gets work.
        half = (B + 1) // 2
        return min(MAX_TB, ((half + 7) // 8) * 8)
    return MAX_TB


def classifier_forward_padded(x, weight, bias):
    """x: (B, 1152), weight: (C, 1152), bias: (C,) -> (B, 128) padded output.

    Columns >= C are large-negative junk; the consumer should slice/ignore
    them (keeping them avoids an extra HBM pass over the output).
    """
    B, D = x.shape
    assert D == IN_FEATURES and weight.shape[1] == D

    w_t, b_pad, C_pad = _preprocess_params(weight, bias)

    TB = _choose_batch_tile(B)
    grid = (pl.cdiv(B, TB),)

    return pl.pallas_call(
        classifier_kernel,
        out_shape=jax.ShapeDtypeStruct((B, C_pad), jnp.float32),
        grid=grid,
        in_specs=[
            pl.BlockSpec((TB, D), lambda i: (i, 0)),       # streamed over B
            pl.BlockSpec((D, C_pad), lambda i: (0, 0)),    # resident weight
            pl.BlockSpec((1, C_pad), lambda i: (0, 0)),    # resident bias
        ],
        out_specs=pl.BlockSpec((TB, C_pad), lambda i: (i, 0)),
        compiler_params=pltpu.CompilerParams(
            # Batch tiles are independent -> shard across v7x's 2 TensorCores.
            dimension_semantics=("parallel",),
            # TB=2048 double-buffered activations (~22 MiB) must fit v5e's
            # 16 MiB scoped default too, so raise the scoped limit explicitly.
            vmem_limit_bytes=VMEM_LIMIT_BYTES,
        ),
    )(x, w_t, b_pad)


def classifier_forward(x, weight, bias):
    """Module-faithful entry point: returns (B, C) log-probabilities."""
    C = weight.shape[0]
    out_padded = classifier_forward_padded(x, weight, bias)
    # TODO(synk): downstream consumers should take the padded output directly
    # (or fuse this slice) to avoid an extra HBM pass for large batches.
    return out_padded[:, :C]


def init_params(key, num_classes):
    """Deterministic init mimicking nn.Linear default (uniform +/- 1/sqrt(fan_in))."""
    kw, kb = jax.random.split(key)
    bound = 1.0 / jnp.sqrt(float(IN_FEATURES))
    weight = jax.random.uniform(
        kw, (num_classes, IN_FEATURES), jnp.float32, minval=-bound, maxval=bound)
    bias = jax.random.uniform(
        kb, (num_classes,), jnp.float32, minval=-bound, maxval=bound)
    return weight, bias


def reference_forward(x, weight, bias):
    """Pure-JAX reference of the PyTorch forward for the correctness check."""
    norm = jnp.sqrt(jnp.sum(weight * weight, axis=1, keepdims=True))
    scale = jnp.where(norm > MAX_NORM, MAX_NORM / (norm + RENORM_EPS), 1.0)
    w = weight * scale
    logits = x @ w.T + bias
    return jax.nn.log_softmax(logits, axis=1)


if __name__ == "__main__":
    num_classes = 4
    batch = 2

    key = jax.random.PRNGKey(0)
    kx, kp = jax.random.split(key)
    x = jax.random.normal(kx, (batch, IN_FEATURES), dtype=jnp.float32)
    weight, bias = init_params(kp, num_classes)

    fwd = jax.jit(classifier_forward)
    out = jax.block_until_ready(fwd(x, weight, bias))

    ref = reference_forward(x, weight, bias)
    assert out.shape == (batch, num_classes)
    assert bool(jnp.all(jnp.isfinite(out)))
    assert jnp.allclose(out, ref, atol=1e-5, rtol=1e-5)

    print("KERNEL_OK")
</pallas_src>

<mosaic_0001>
module attributes {stable_mosaic.version = 11 : i64} {
  func.func @classifier_kernel(%arg0: i32, %arg1: memref<2x1152xf32, #tpu.memory_space<vmem>>, %arg2: memref<1152x128xf32, #tpu.memory_space<vmem>>, %arg3: memref<1x128xf32, #tpu.memory_space<vmem>>, %arg4: memref<2x128xf32, #tpu.memory_space<vmem>>) attributes {dimension_semantics = [#tpu.dimension_semantics<parallel>], iteration_bounds = array<i64: 1>, scalar_prefetch = 0 : i64, scratch_operands = 0 : i64, tpu.core_type = #tpu.core_type<tc>, window_params = [{transform_indices = @transform_0, window_bounds = array<i64: 2, 1152>}, {pipeline_mode = #tpu.pipeline_mode<synchronous>, transform_indices = @transform_1, window_bounds = array<i64: 1152, 128>}, {pipeline_mode = #tpu.pipeline_mode<synchronous>, transform_indices = @transform_2, window_bounds = array<i64: 1, 128>}, {transform_indices = @transform_3, window_bounds = array<i64: 2, 128>}]} {
    %c0 = arith.constant 0 : index
    %c0_0 = arith.constant 0 : index
    %0 = vector.load %arg1[%c0, %c0_0] : memref<2x1152xf32, #tpu.memory_space<vmem>>, vector<2x1152xf32>
    %c0_1 = arith.constant 0 : index
    %c0_2 = arith.constant 0 : index
    %1 = vector.load %arg2[%c0_1, %c0_2] : memref<1152x128xf32, #tpu.memory_space<vmem>>, vector<1152x128xf32>
    %cst = arith.constant dense<0.000000e+00> : vector<2x128xf32>
    %2 = tpu.matmul %0, %1, %cst {dimension_numbers = #tpu.dot_dimension_numbers<[1], [0], [0], [1], [0, 0, 1, 1], [], []>} : vector<2x1152xf32>, vector<1152x128xf32>, vector<2x128xf32> -> vector<2x128xf32>
    %c0_3 = arith.constant 0 : index
    %c0_4 = arith.constant 0 : index
    %3 = vector.load %arg3[%c0_3, %c0_4] : memref<1x128xf32, #tpu.memory_space<vmem>>, vector<1x128xf32>
    %4 = vector.broadcast %3 : vector<1x128xf32> to vector<2x128xf32>
    %5 = arith.addf %2, %4 : vector<2x128xf32>
    %cst_5 = arith.constant dense<0xFF800000> : vector<2xf32>
    %6 = vector.multi_reduction <maximumf>, %5, %cst_5 [1] : vector<2x128xf32> to vector<2xf32>
    %7 = vector.shape_cast %6 : vector<2xf32> to vector<2x1xf32>
    %8 = vector.broadcast %7 : vector<2x1xf32> to vector<2x128xf32>
    %9 = arith.subf %5, %8 : vector<2x128xf32>
    %10 = math.exp %9 : vector<2x128xf32>
    %cst_6 = arith.constant dense<0.000000e+00> : vector<2xf32>
    %11 = vector.multi_reduction <add>, %10, %cst_6 [1] : vector<2x128xf32> to vector<2xf32>
    %12 = vector.shape_cast %11 : vector<2xf32> to vector<2x1xf32>
    %13 = math.log %12 : vector<2x1xf32>
    %14 = vector.broadcast %13 : vector<2x1xf32> to vector<2x128xf32>
    %15 = arith.subf %9, %14 : vector<2x128xf32>
    %c0_7 = arith.constant 0 : index
    %c0_8 = arith.constant 0 : index
    %16 = vector.load %arg4[%c0_7, %c0_8] : memref<2x128xf32, #tpu.memory_space<vmem>>, vector<2x128xf32>
    tpu.vector_store %arg4[%c0_7, %c0_8], %15 {strides = array<i32>} : memref<2x128xf32, #tpu.memory_space<vmem>>, vector<2x128xf32>,
    return
  }
  func.func @transform_0(%arg0: i32) -> (i32, i32) {
    %c0_i32 = arith.constant 0 : i32
    %c0_i32_0 = arith.constant 0 : i32
    return %arg0, %c0_i32 : i32, i32
  }
  func.func @transform_1(%arg0: i32) -> (i32, i32) {
    %c0_i32 = arith.constant 0 : i32
    %c0_i32_0 = arith.constant 0 : i32
    %c0_i32_1 = arith.constant 0 : i32
    return %c0_i32, %c0_i32_0 : i32, i32
  }
  func.func @transform_2(%arg0: i32) -> (i32, i32) {
    %c0_i32 = arith.constant 0 : i32
    %c0_i32_0 = arith.constant 0 : i32
    %c0_i32_1 = arith.constant 0 : i32
    return %c0_i32, %c0_i32_0 : i32, i32
  }
  func.func @transform_3(%arg0: i32) -> (i32, i32) {
    %c0_i32 = arith.constant 0 : i32
    %c0_i32_0 = arith.constant 0 : i32
    return %arg0, %c0_i32 : i32, i32
  }
}

</mosaic_0001>

<llo_original>
// kernel: classifier_forward.1
$region0: #{classifier_forward.1}
  #allocation0 [shape = 'u32[]', space=smem, size = 0x4, offset = 0x4, fixed_abs, tag = 'smem constant byte address 0x4 - core index']
  #allocation1 [shape = 'u32[144,128]{1,0:T(1,128)}', space=vmem, size = 0x12000, scoped, tag = 'internal scratch']
  %s0 = inlined_call_operand.vmem [shape: f32[2,1152], index: 0, kind: input, shape index: {}]
  %s1 = inlined_call_operand.vmem [shape: f32[1152,128], index: 1, kind: input, shape index: {}]
  %s2 = inlined_call_operand.vmem [shape: f32[1,128], index: 2, kind: input, shape index: {}]
  %s3 = inlined_call_operand.hbm [shape: f32[2,128], index: 3, kind: output, shape index: {}]
  %s4 = sld [smem:[#allocation0]]
  $region22: #{classifier_forward.1} parent=0
    _
  %s6 = ssub.s32 1, %s4
  %s7 = scalar_select 0, %s6, %s4
  $region1: #{classifier_forward.1} parent=0
    #allocation2 [shape = 'u8[1024]{0}', space=vmem, size = 0x400, scoped, tag = 'output window, operand 0, single buffered']
    #allocation3 [shape = 's32[1]{0}', space=sflag, size = 0x4, scoped, tag = 'scoped memory for classifier_forward.1']
    %8 = vsyncpa [#allocation3], 0
    // Predicated region
    $region2: #{classifier_forward.1} parent=1 // pred_check
      _
    $region3: #{classifier_forward.1} parent=1 // pred_check_branch
      %10 = sbr.rel (0) target = $region5
    $region4: #{classifier_forward.1} parent=1 // pred_region
      _
    $region5: #{classifier_forward.1} parent=1 // pred_fallthru
      _
    // Predicated region
    $region6: #{classifier_forward.1} parent=1 // pred_check
      _
    $region7: #{classifier_forward.1} parent=1 // pred_check_branch
      %12 = sbr.rel (0) target = $region9
    $region8: #{classifier_forward.1} parent=1 // pred_region
      _
    $region9: #{classifier_forward.1} parent=1 // pred_fallthru
      _
    // Predicated region
    $region10: #{classifier_forward.1} parent=1 // pred_check
      _
    $region11: #{classifier_forward.1} parent=1 // pred_check_branch
      %14 = sbr.rel (0) target = $region13
    $region12: #{classifier_forward.1} parent=1 // pred_region
      _
    $region13: #{classifier_forward.1} parent=1 // pred_fallthru
      _
    %v15 = vld [vmem:[%s0] sm:$0xff]
    %v16 = vld [vmem:[%s0 + $0x8] sm:$0xff]
    %v17 = vld [vmem:[%s0 + $0x10] sm:$0x3]
    %v18 = vld [vmem:[%s1] sm:$0xff]
    %v19 = vld [vmem:[%s1 + $0x8] sm:$0xff]
    %v20 = vld [vmem:[%s1 + $0x10] sm:$0xff]
    %v21 = vld [vmem:[%s1 + $0x18] sm:$0xff]
    %v22 = vld [vmem:[%s1 + $0x20] sm:$0xff]
    %v23 = vld [vmem:[%s1 + $0x28] sm:$0xff]
    %v24 = vld [vmem:[%s1 + $0x30] sm:$0xff]
    %v25 = vld [vmem:[%s1 + $0x38] sm:$0xff]
    %v26 = vld [vmem:[%s1 + $0x40] sm:$0xff]
    %v27 = vld [vmem:[%s1 + $0x48] sm:$0xff]
    %v28 = vld [vmem:[%s1 + $0x50] sm:$0xff]
    %v29 = vld [vmem:[%s1 + $0x58] sm:$0xff]
    %v30 = vld [vmem:[%s1 + $0x60] sm:$0xff]
    %v31 = vld [vmem:[%s1 + $0x68] sm:$0xff]
    %v32 = vld [vmem:[%s1 + $0x70] sm:$0xff]
    %v33 = vld [vmem:[%s1 + $0x78] sm:$0xff]
    %v34 = vld [vmem:[%s1 + $0x80] sm:$0xff]
    %v35 = vld [vmem:[%s1 + $0x88] sm:$0xff]
    %v36 = vld [vmem:[%s1 + $0x90] sm:$0xff]
    %v37 = vld [vmem:[%s1 + $0x98] sm:$0xff]
    %v38 = vld [vmem:[%s1 + $0xa0] sm:$0xff]
    %v39 = vld [vmem:[%s1 + $0xa8] sm:$0xff]
    %v40 = vld [vmem:[%s1 + $0xb0] sm:$0xff]
    %v41 = vld [vmem:[%s1 + $0xb8] sm:$0xff]
    %v42 = vld [vmem:[%s1 + $0xc0] sm:$0xff]
    %v43 = vld [vmem:[%s1 + $0xc8] sm:$0xff]
    %v44 = vld [vmem:[%s1 + $0xd0] sm:$0xff]
    %v45 = vld [vmem:[%s1 + $0xd8] sm:$0xff]
    %v46 = vld [vmem:[%s1 + $0xe0] sm:$0xff]
    %v47 = vld [vmem:[%s1 + $0xe8] sm:$0xff]
    %v48 = vld [vmem:[%s1 + $0xf0] sm:$0xff]
    %v49 = vld [vmem:[%s1 + $0xf8] sm:$0xff]
    %v50 = vld [vmem:[%s1 + $0x100] sm:$0xff]
    %v51 = vld [vmem:[%s1 + $0x108] sm:$0xff]
    %v52 = vld [vmem:[%s1 + $0x110] sm:$0xff]
    %v53 = vld [vmem:[%s1 + $0x118] sm:$0xff]
    %v54 = vld [vmem:[%s1 + $0x120] sm:$0xff]
    %v55 = vld [vmem:[%s1 + $0x128] sm:$0xff]
    %v56 = vld [vmem:[%s1 + $0x130] sm:$0xff]
    %v57 = vld [vmem:[%s1 + $0x138] sm:$0xff]
    %v58 = vld [vmem:[%s1 + $0x140] sm:$0xff]
    %v59 = vld [vmem:[%s1 + $0x148] sm:$0xff]
    %v60 = vld [vmem:[%s1 + $0x150] sm:$0xff]
    %v61 = vld [vmem:[%s1 + $0x158] sm:$0xff]
    %v62 = vld [vmem:[%s1 + $0x160] sm:$0xff]
    %v63 = vld [vmem:[%s1 + $0x168] sm:$0xff]
    %v64 = vld [vmem:[%s1 + $0x170] sm:$0xff]
    %v65 = vld [vmem:[%s1 + $0x178] sm:$0xff]
    %v66 = vld [vmem:[%s1 + $0x180] sm:$0xff]
    %v67 = vld [vmem:[%s1 + $0x188] sm:$0xff]
    %v68 = vld [vmem:[%s1 + $0x190] sm:$0xff]
    %v69 = vld [vmem:[%s1 + $0x198] sm:$0xff]
    %v70 = vld [vmem:[%s1 + $0x1a0] sm:$0xff]
    %v71 = vld [vmem:[%s1 + $0x1a8] sm:$0xff]
    %v72 = vld [vmem:[%s1 + $0x1b0] sm:$0xff]
    %v73 = vld [vmem:[%s1 + $0x1b8] sm:$0xff]
    %v74 = vld [vmem:[%s1 + $0x1c0] sm:$0xff]
    %v75 = vld [vmem:[%s1 + $0x1c8] sm:$0xff]
    %v76 = vld [vmem:[%s1 + $0x1d0] sm:$0xff]
    %v77 = vld [vmem:[%s1 + $0x1d8] sm:$0xff]
    %v78 = vld [vmem:[%s1 + $0x1e0] sm:$0xff]
    %v79 = vld [vmem:[%s1 + $0x1e8] sm:$0xff]
    %v80 = vld [vmem:[%s1 + $0x1f0] sm:$0xff]
    %v81 = vld [vmem:[%s1 + $0x1f8] sm:$0xff]
    %v82 = vld [vmem:[%s1 + $0x200] sm:$0xff]
    %v83 = vld [vmem:[%s1 + $0x208] sm:$0xff]
    %v84 = vld [vmem:[%s1 + $0x210] sm:$0xff]
    %v85 = vld [vmem:[%s1 + $0x218] sm:$0xff]
    %v86 = vld [vmem:[%s1 + $0x220] sm:$0xff]
    %v87 = vld [vmem:[%s1 + $0x228] sm:$0xff]
    %v88 = vld [vmem:[%s1 + $0x230] sm:$0xff]
    %v89 = vld [vmem:[%s1 + $0x238] sm:$0xff]
    %v90 = vld [vmem:[%s1 + $0x240] sm:$0xff]
    %v91 = vld [vmem:[%s1 + $0x248] sm:$0xff]
    %v92 = vld [vmem:[%s1 + $0x250] sm:$0xff]
    %v93 = vld [vmem:[%s1 + $0x258] sm:$0xff]
    %v94 = vld [vmem:[%s1 + $0x260] sm:$0xff]
    %v95 = vld [vmem:[%s1 + $0x268] sm:$0xff]
    %v96 = vld [vmem:[%s1 + $0x270] sm:$0xff]
    %v97 = vld [vmem:[%s1 + $0x278] sm:$0xff]
    %v98 = vld [vmem:[%s1 + $0x280] sm:$0xff]
    %v99 = vld [vmem:[%s1 + $0x288] sm:$0xff]
    %v100 = vld [vmem:[%s1 + $0x290] sm:$0xff]
    %v101 = vld [vmem:[%s1 + $0x298] sm:$0xff]
    %v102 = vld [vmem:[%s1 + $0x2a0] sm:$0xff]
    %v103 = vld [vmem:[%s1 + $0x2a8] sm:$0xff]
    %v104 = vld [vmem:[%s1 + $0x2b0] sm:$0xff]
    %v105 = vld [vmem:[%s1 + $0x2b8] sm:$0xff]
    %v106 = vld [vmem:[%s1 + $0x2c0] sm:$0xff]
    %v107 = vld [vmem:[%s1 + $0x2c8] sm:$0xff]
    %v108 = vld [vmem:[%s1 + $0x2d0] sm:$0xff]
    %v109 = vld [vmem:[%s1 + $0x2d8] sm:$0xff]
    %v110 = vld [vmem:[%s1 + $0x2e0] sm:$0xff]
    %v111 = vld [vmem:[%s1 + $0x2e8] sm:$0xff]
    %v112 = vld [vmem:[%s1 + $0x2f0] sm:$0xff]
    %v113 = vld [vmem:[%s1 + $0x2f8] sm:$0xff]
    %v114 = vld [vmem:[%s1 + $0x300] sm:$0xff]
    %v115 = vld [vmem:[%s1 + $0x308] sm:$0xff]
    %v116 = vld [vmem:[%s1 + $0x310] sm:$0xff]
    %v117 = vld [vmem:[%s1 + $0x318] sm:$0xff]
    %v118 = vld [vmem:[%s1 + $0x320] sm:$0xff]
    %v119 = vld [vmem:[%s1 + $0x328] sm:$0xff]
    %v120 = vld [vmem:[%s1 + $0x330] sm:$0xff]
    %v121 = vld [vmem:[%s1 + $0x338] sm:$0xff]
    %v122 = vld [vmem:[%s1 + $0x340] sm:$0xff]
    %v123 = vld [vmem:[%s1 + $0x348] sm:$0xff]
    %v124 = vld [vmem:[%s1 + $0x350] sm:$0xff]
    %v125 = vld [vmem:[%s1 + $0x358] sm:$0xff]
    %v126 = vld [vmem:[%s1 + $0x360] sm:$0xff]
    %v127 = vld [vmem:[%s1 + $0x368] sm:$0xff]
    %v128 = vld [vmem:[%s1 + $0x370] sm:$0xff]
    %v129 = vld [vmem:[%s1 + $0x378] sm:$0xff]
    %v130 = vld [vmem:[%s1 + $0x380] sm:$0xff]
    %v131 = vld [vmem:[%s1 + $0x388] sm:$0xff]
    %v132 = vld [vmem:[%s1 + $0x390] sm:$0xff]
    %v133 = vld [vmem:[%s1 + $0x398] sm:$0xff]
    %v134 = vld [vmem:[%s1 + $0x3a0] sm:$0xff]
    %v135 = vld [vmem:[%s1 + $0x3a8] sm:$0xff]
    %v136 = vld [vmem:[%s1 + $0x3b0] sm:$0xff]
    %v137 = vld [vmem:[%s1 + $0x3b8] sm:$0xff]
    %v138 = vld [vmem:[%s1 + $0x3c0] sm:$0xff]
    %v139 = vld [vmem:[%s1 + $0x3c8] sm:$0xff]
    %v140 = vld [vmem:[%s1 + $0x3d0] sm:$0xff]
    %v141 = vld [vmem:[%s1 + $0x3d8] sm:$0xff]
    %v142 = vld [vmem:[%s1 + $0x3e0] sm:$0xff]
    %v143 = vld [vmem:[%s1 + $0x3e8] sm:$0xff]
    %v144 = vld [vmem:[%s1 + $0x3f0] sm:$0xff]
    %v145 = vld [vmem:[%s1 + $0x3f8] sm:$0xff]
    %v146 = vld [vmem:[%s1 + $0x400] sm:$0xff]
    %v147 = vld [vmem:[%s1 + $0x408] sm:$0xff]
    %v148 = vld [vmem:[%s1 + $0x410] sm:$0xff]
    %v149 = vld [vmem:[%s1 + $0x418] sm:$0xff]
    %v150 = vld [vmem:[%s1 + $0x420] sm:$0xff]
    %v151 = vld [vmem:[%s1 + $0x428] sm:$0xff]
    %v152 = vld [vmem:[%s1 + $0x430] sm:$0xff]
    %v153 = vld [vmem:[%s1 + $0x438] sm:$0xff]
    %v154 = vld [vmem:[%s1 + $0x440] sm:$0xff]
    %v155 = vld [vmem:[%s1 + $0x448] sm:$0xff]
    %v156 = vld [vmem:[%s1 + $0x450] sm:$0xff]
    %v157 = vld [vmem:[%s1 + $0x458] sm:$0xff]
    %v158 = vld [vmem:[%s1 + $0x460] sm:$0xff]
    %v159 = vld [vmem:[%s1 + $0x468] sm:$0xff]
    %v160 = vld [vmem:[%s1 + $0x470] sm:$0xff]
    %v161 = vld [vmem:[%s1 + $0x478] sm:$0xff]
    %v162 = vld [vmem:[%s2] sm:$0x1]
    %v164 = vlaneseq
    %v165 = vshrl.u32 %v164, 7
    %v166 = vsub.s32 0, %v165
    %v167 = vrot.slane %v162, %v166
    %v172 = vcombine.high %v15, %v15
    %v174 = vunpack.c.l.s4 1983009808
    %v175 = vunpack.c.0.s8 %v174
    %v176 = vlaneseq
    %v177 = vshrl.u32 %v176, 7
    %v178 = vsub.s32 %v175, %v177
    %v179 = vrot.slane %v15, %v178
    %v181 = vunpack.c.l.s4 1983009808
    %v182 = vunpack.c.0.s8 %v181
    %v183 = vlaneseq
    %v184 = vshrl.u32 %v183, 7
    %v185 = vsub.s32 %v182, %v184
    %v186 = vrot.slane %v172, %v185
    %v187 = vcombine.high %v179, %v179
    %v188 = vcombine.high %v186, %v186
    %v189 = vcombine.high %v16, %v16
    %v191 = vunpack.c.l.s4 1983009808
    %v192 = vunpack.c.0.s8 %v191
    %v193 = vlaneseq
    %v194 = vshrl.u32 %v193, 7
    %v195 = vsub.s32 %v192, %v194
    %v196 = vrot.slane %v16, %v195
    %v198 = vunpack.c.l.s4 1983009808
    %v199 = vunpack.c.0.s8 %v198
    %v200 = vlaneseq
    %v201 = vshrl.u32 %v200, 7
    %v202 = vsub.s32 %v199, %v201
    %v203 = vrot.slane %v189, %v202
    %v204 = vcombine.high %v196, %v196
    %v205 = vcombine.high %v203, %v203
    %v207 = vunpack.c.l.s4 1983009808
    %v208 = vunpack.c.0.s8 %v207
    %v209 = vlaneseq
    %v210 = vshrl.u32 %v209, 7
    %v211 = vsub.s32 %v208, %v210
    %v212 = vrot.slane %v17, %v211
    %222 = vmatprep.subr.mxu0 0.0
    %223 = vmatpush1.msra.mxu0 %v18
    %224 = vmatprep.subr.mxu0 0.0
    %225 = vmatpush1.msra.mxu0 %v19
    %226 = vmatprep.subr.mxu0 0.0
    %227 = vmatpush1.msra.mxu0 %v20
    %228 = vmatprep.subr.mxu0 0.0
    %229 = vmatpush1.msra.mxu0 %v21
    %230 = vmatprep.subr.mxu0 0.0
    %231 = vmatpush1.msra.mxu0 %v22
    %232 = vmatprep.subr.mxu0 0.0
    %233 = vmatpush1.msra.mxu0 %v23
    %234 = vmatprep.subr.mxu0 0.0
    %235 = vmatpush1.msra.mxu0 %v24
    %236 = vmatprep.subr.mxu0 0.0
    %237 = vmatpush1.msra.mxu0 %v25
    %238 = vmatprep.subr.mxu0 0.0
    %239 = vmatpush1.msra.mxu0 %v26
    %240 = vmatprep.subr.mxu0 0.0
    %241 = vmatpush1.msra.mxu0 %v27
    %242 = vmatprep.subr.mxu0 0.0
    %243 = vmatpush1.msra.mxu0 %v28
    %244 = vmatprep.subr.mxu0 0.0
    %245 = vmatpush1.msra.mxu0 %v29
    %246 = vmatprep.subr.mxu0 0.0
    %247 = vmatpush1.msra.mxu0 %v30
    %248 = vmatprep.subr.mxu0 0.0
    %249 = vmatpush1.msra.mxu0 %v31
    %250 = vmatprep.subr.mxu0 0.0
    %251 = vmatpush1.msra.mxu0 %v32
    %252 = vmatprep.subr.mxu0 0.0
    %253 = vmatpush1.msra.mxu0 %v33
    %254 = vmatprep.subr.mxu0 0.0
    %255 = vmatpush1.msra.mxu0 %v34
    %256 = vmatprep.subr.mxu0 0.0
    %257 = vmatpush1.msra.mxu0 %v35
    %258 = vmatprep.subr.mxu0 0.0
    %259 = vmatpush1.msra.mxu0 %v36
    %260 = vmatprep.subr.mxu0 0.0
    %261 = vmatpush1.msra.mxu0 %v37
    %262 = vmatprep.subr.mxu0 0.0
    %263 = vmatpush1.msra.mxu0 %v38
    %264 = vmatprep.subr.mxu0 0.0
    %265 = vmatpush1.msra.mxu0 %v39
    %266 = vmatprep.subr.mxu0 0.0
    %267 = vmatpush1.msra.mxu0 %v40
    %268 = vmatprep.subr.mxu0 0.0
    %269 = vmatpush1.msra.mxu0 %v41
    %270 = vmatprep.subr.mxu0 0.0
    %271 = vmatpush1.msra.mxu0 %v42
    %272 = vmatprep.subr.mxu0 0.0
    %273 = vmatpush1.msra.mxu0 %v43
    %274 = vmatprep.subr.mxu0 0.0
    %275 = vmatpush1.msra.mxu0 %v44
    %276 = vmatprep.subr.mxu0 0.0
    %277 = vmatpush1.msra.mxu0 %v45
    %278 = vmatprep.subr.mxu0 0.0
    %279 = vmatpush1.msra.mxu0 %v46
    %280 = vmatprep.subr.mxu0 0.0
    %281 = vmatpush1.msra.mxu0 %v47
    %282 = vmatprep.subr.mxu0 0.0
    %283 = vmatpush1.msra.mxu0 %v48
    %284 = vmatprep.subr.mxu0 0.0
    %285 = vmatpush1.msra.mxu0 %v49
    %286 = vmatprep.mubr.f32.mxu0 %v187
    %287 = vmatmul.mubr.f32.gmra.mrb[0].mxu0 %v179
    %v288 = vpop.f32.mrb[0].mxu0
    %v289 = vadd.f32 %v167, %v288
    %v290 = vpop.f32.mrb[0].mxu0
    %291 = vdwg.mxu0
    %292 = vmatprep.subr.mxu0 0.0
    %293 = vmatpush1.msra.mxu0 %v50
    %294 = vmatprep.subr.mxu0 0.0
    %295 = vmatpush1.msra.mxu0 %v51
    %296 = vmatprep.subr.mxu0 0.0
    %297 = vmatpush1.msra.mxu0 %v52
    %298 = vmatprep.subr.mxu0 0.0
    %299 = vmatpush1.msra.mxu0 %v53
    %300 = vmatprep.subr.mxu0 0.0
    %301 = vmatpush1.msra.mxu0 %v54
    %302 = vmatprep.subr.mxu0 0.0
    %303 = vmatpush1.msra.mxu0 %v55
    %304 = vmatprep.subr.mxu0 0.0
    %305 = vmatpush1.msra.mxu0 %v56
    %306 = vmatprep.subr.mxu0 0.0
    %307 = vmatpush1.msra.mxu0 %v57
    %308 = vmatprep.subr.mxu0 0.0
    %309 = vmatpush1.msra.mxu0 %v58
    %310 = vmatprep.subr.mxu0 0.0
    %311 = vmatpush1.msra.mxu0 %v59
    %312 = vmatprep.subr.mxu0 0.0
    %313 = vmatpush1.msra.mxu0 %v60
    %314 = vmatprep.subr.mxu0 0.0
    %315 = vmatpush1.msra.mxu0 %v61
    %316 = vmatprep.subr.mxu0 0.0
    %317 = vmatpush1.msra.mxu0 %v62
    %318 = vmatprep.subr.mxu0 0.0
    %319 = vmatpush1.msra.mxu0 %v63
    %320 = vmatprep.subr.mxu0 0.0
    %321 = vmatpush1.msra.mxu0 %v64
    %322 = vmatprep.subr.mxu0 0.0
    %323 = vmatpush1.msra.mxu0 %v65
    %324 = vmatprep.subr.mxu0 0.0
    %325 = vmatpush1.msra.mxu0 %v66
    %326 = vmatprep.subr.mxu0 0.0
    %327 = vmatpush1.msra.mxu0 %v67
    %328 = vmatprep.subr.mxu0 0.0
    %329 = vmatpush1.msra.mxu0 %v68
    %330 = vmatprep.subr.mxu0 0.0
    %331 = vmatpush1.msra.mxu0 %v69
    %332 = vmatprep.subr.mxu0 0.0
    %333 = vmatpush1.msra.mxu0 %v70
    %334 = vmatprep.subr.mxu0 0.0
    %335 = vmatpush1.msra.mxu0 %v71
    %336 = vmatprep.subr.mxu0 0.0
    %337 = vmatpush1.msra.mxu0 %v72
    %338 = vmatprep.subr.mxu0 0.0
    %339 = vmatpush1.msra.mxu0 %v73
    %340 = vmatprep.subr.mxu0 0.0
    %341 = vmatpush1.msra.mxu0 %v74
    %342 = vmatprep.subr.mxu0 0.0
    %343 = vmatpush1.msra.mxu0 %v75
    %344 = vmatprep.subr.mxu0 0.0
    %345 = vmatpush1.msra.mxu0 %v76
    %346 = vmatprep.subr.mxu0 0.0
    %347 = vmatpush1.msra.mxu0 %v77
    %348 = vmatprep.subr.mxu0 0.0
    %349 = vmatpush1.msra.mxu0 %v78
    %350 = vmatprep.subr.mxu0 0.0
    %351 = vmatpush1.msra.mxu0 %v79
    %352 = vmatprep.subr.mxu0 0.0
    %353 = vmatpush1.msra.mxu0 %v80
    %354 = vmatprep.subr.mxu0 0.0
    %355 = vmatpush1.msra.mxu0 %v81
    %356 = vmatprep.mubr.f32.mxu0 %v188
    %357 = vmatmul.mubr.f32.gmra.mrb[0].mxu0 %v186
    %v358 = vpop.f32.mrb[0].mxu0
    %v359 = vadd.f32 %v289, %v358
    %v360 = vpop.f32.mrb[0].mxu0
    %361 = vdwg.mxu0
    %362 = vmatprep.subr.mxu0 0.0
    %363 = vmatpush1.msra.mxu0 %v82
    %364 = vmatprep.subr.mxu0 0.0
    %365 = vmatpush1.msra.mxu0 %v83
    %366 = vmatprep.subr.mxu0 0.0
    %367 = vmatpush1.msra.mxu0 %v84
    %368 = vmatprep.subr.mxu0 0.0
    %369 = vmatpush1.msra.mxu0 %v85
    %370 = vmatprep.subr.mxu0 0.0
    %371 = vmatpush1.msra.mxu0 %v86
    %372 = vmatprep.subr.mxu0 0.0
    %373 = vmatpush1.msra.mxu0 %v87
    %374 = vmatprep.subr.mxu0 0.0
    %375 = vmatpush1.msra.mxu0 %v88
    %376 = vmatprep.subr.mxu0 0.0
    %377 = vmatpush1.msra.mxu0 %v89
    %378 = vmatprep.subr.mxu0 0.0
    %379 = vmatpush1.msra.mxu0 %v90
    %380 = vmatprep.subr.mxu0 0.0
    %381 = vmatpush1.msra.mxu0 %v91
    %382 = vmatprep.subr.mxu0 0.0
    %383 = vmatpush1.msra.mxu0 %v92
    %384 = vmatprep.subr.mxu0 0.0
    %385 = vmatpush1.msra.mxu0 %v93
    %386 = vmatprep.subr.mxu0 0.0
    %387 = vmatpush1.msra.mxu0 %v94
    %388 = vmatprep.subr.mxu0 0.0
    %389 = vmatpush1.msra.mxu0 %v95
    %390 = vmatprep.subr.mxu0 0.0
    %391 = vmatpush1.msra.mxu0 %v96
    %392 = vmatprep.subr.mxu0 0.0
    %393 = vmatpush1.msra.mxu0 %v97
    %394 = vmatprep.subr.mxu0 0.0
    %395 = vmatpush1.msra.mxu0 %v98
    %396 = vmatprep.subr.mxu0 0.0
    %397 = vmatpush1.msra.mxu0 %v99
    %398 = vmatprep.subr.mxu0 0.0
    %399 = vmatpush1.msra.mxu0 %v100
    %400 = vmatprep.subr.mxu0 0.0
    %401 = vmatpush1.msra.mxu0 %v101
    %402 = vmatprep.subr.mxu0 0.0
    %403 = vmatpush1.msra.mxu0 %v102
    %404 = vmatprep.subr.mxu0 0.0
    %405 = vmatpush1.msra.mxu0 %v103
    %406 = vmatprep.subr.mxu0 0.0
    %407 = vmatpush1.msra.mxu0 %v104
    %408 = vmatprep.subr.mxu0 0.0
    %409 = vmatpush1.msra.mxu0 %v105
    %410 = vmatprep.subr.mxu0 0.0
    %411 = vmatpush1.msra.mxu0 %v106
    %412 = vmatprep.subr.mxu0 0.0
    %413 = vmatpush1.msra.mxu0 %v107
    %414 = vmatprep.subr.mxu0 0.0
    %415 = vmatpush1.msra.mxu0 %v108
    %416 = vmatprep.subr.mxu0 0.0
    %417 = vmatpush1.msra.mxu0 %v109
    %418 = vmatprep.subr.mxu0 0.0
    %419 = vmatpush1.msra.mxu0 %v110
    %420 = vmatprep.subr.mxu0 0.0
    %421 = vmatpush1.msra.mxu0 %v111
    %422 = vmatprep.subr.mxu0 0.0
    %423 = vmatpush1.msra.mxu0 %v112
    %424 = vmatprep.subr.mxu0 0.0
    %425 = vmatpush1.msra.mxu0 %v113
    %426 = vmatprep.mubr.f32.mxu0 %v204
    %427 = vmatmul.mubr.f32.gmra.mrb[0].mxu0 %v196
    %v428 = vpop.f32.mrb[0].mxu0
    %v429 = vadd.f32 %v359, %v428
    %v430 = vpop.f32.mrb[0].mxu0
    %431 = vdwg.mxu0
    %432 = vmatprep.subr.mxu0 0.0
    %433 = vmatpush1.msra.mxu0 %v114
    %434 = vmatprep.subr.mxu0 0.0
    %435 = vmatpush1.msra.mxu0 %v115
    %436 = vmatprep.subr.mxu0 0.0
    %437 = vmatpush1.msra.mxu0 %v116
    %438 = vmatprep.subr.mxu0 0.0
    %439 = vmatpush1.msra.mxu0 %v117
    %440 = vmatprep.subr.mxu0 0.0
    %441 = vmatpush1.msra.mxu0 %v118
    %442 = vmatprep.subr.mxu0 0.0
    %443 = vmatpush1.msra.mxu0 %v119
    %444 = vmatprep.subr.mxu0 0.0
    %445 = vmatpush1.msra.mxu0 %v120
    %446 = vmatprep.subr.mxu0 0.0
    %447 = vmatpush1.msra.mxu0 %v121
    %448 = vmatprep.subr.mxu0 0.0
    %449 = vmatpush1.msra.mxu0 %v122
    %450 = vmatprep.subr.mxu0 0.0
    %451 = vmatpush1.msra.mxu0 %v123
    %452 = vmatprep.subr.mxu0 0.0
    %453 = vmatpush1.msra.mxu0 %v124
    %454 = vmatprep.subr.mxu0 0.0
    %455 = vmatpush1.msra.mxu0 %v125
    %456 = vmatprep.subr.mxu0 0.0
    %457 = vmatpush1.msra.mxu0 %v126
    %458 = vmatprep.subr.mxu0 0.0
    %459 = vmatpush1.msra.mxu0 %v127
    %460 = vmatprep.subr.mxu0 0.0
    %461 = vmatpush1.msra.mxu0 %v128
    %462 = vmatprep.subr.mxu0 0.0
    %463 = vmatpush1.msra.mxu0 %v129
    %464 = vmatprep.subr.mxu0 0.0
    %465 = vmatpush1.msra.mxu0 %v130
    %466 = vmatprep.subr.mxu0 0.0
    %467 = vmatpush1.msra.mxu0 %v131
    %468 = vmatprep.subr.mxu0 0.0
    %469 = vmatpush1.msra.mxu0 %v132
    %470 = vmatprep.subr.mxu0 0.0
    %471 = vmatpush1.msra.mxu0 %v133
    %472 = vmatprep.subr.mxu0 0.0
    %473 = vmatpush1.msra.mxu0 %v134
    %474 = vmatprep.subr.mxu0 0.0
    %475 = vmatpush1.msra.mxu0 %v135
    %476 = vmatprep.subr.mxu0 0.0
    %477 = vmatpush1.msra.mxu0 %v136
    %478 = vmatprep.subr.mxu0 0.0
    %479 = vmatpush1.msra.mxu0 %v137
    %480 = vmatprep.subr.mxu0 0.0
    %481 = vmatpush1.msra.mxu0 %v138
    %482 = vmatprep.subr.mxu0 0.0
    %483 = vmatpush1.msra.mxu0 %v139
    %484 = vmatprep.subr.mxu0 0.0
    %485 = vmatpush1.msra.mxu0 %v140
    %486 = vmatprep.subr.mxu0 0.0
    %487 = vmatpush1.msra.mxu0 %v141
    %488 = vmatprep.subr.mxu0 0.0
    %489 = vmatpush1.msra.mxu0 %v142
    %490 = vmatprep.subr.mxu0 0.0
    %491 = vmatpush1.msra.mxu0 %v143
    %492 = vmatprep.subr.mxu0 0.0
    %493 = vmatpush1.msra.mxu0 %v144
    %494 = vmatprep.subr.mxu0 0.0
    %495 = vmatpush1.msra.mxu0 %v145
    %496 = vmatprep.mubr.f32.mxu0 %v205
    %497 = vmatmul.mubr.f32.gmra.mrb[0].mxu0 %v203
    %v498 = vpop.f32.mrb[0].mxu0
    %v499 = vadd.f32 %v429, %v498
    %v500 = vpop.f32.mrb[0].mxu0
    %501 = vdwg.mxu0
    %502 = vmatprep.subr.mxu0 0.0
    %503 = vmatpush1.msra.mxu0 %v146
    %504 = vmatprep.subr.mxu0 0.0
    %505 = vmatpush1.msra.mxu0 %v147
    %506 = vmatprep.subr.mxu0 0.0
    %507 = vmatpush1.msra.mxu0 %v148
    %508 = vmatprep.subr.mxu0 0.0
    %509 = vmatpush1.msra.mxu0 %v149
    %510 = vmatprep.subr.mxu0 0.0
    %511 = vmatpush1.msra.mxu0 %v150
    %512 = vmatprep.subr.mxu0 0.0
    %513 = vmatpush1.msra.mxu0 %v151
    %514 = vmatprep.subr.mxu0 0.0
    %515 = vmatpush1.msra.mxu0 %v152
    %516 = vmatprep.subr.mxu0 0.0
    %517 = vmatpush1.msra.mxu0 %v153
    %518 = vmatprep.subr.mxu0 0.0
    %519 = vmatpush1.msra.mxu0 %v154
    %520 = vmatprep.subr.mxu0 0.0
    %521 = vmatpush1.msra.mxu0 %v155
    %522 = vmatprep.subr.mxu0 0.0
    %523 = vmatpush1.msra.mxu0 %v156
    %524 = vmatprep.subr.mxu0 0.0
    %525 = vmatpush1.msra.mxu0 %v157
    %526 = vmatprep.subr.mxu0 0.0
    %527 = vmatpush1.msra.mxu0 %v158
    %528 = vmatprep.subr.mxu0 0.0
    %529 = vmatpush1.msra.mxu0 %v159
    %530 = vmatprep.subr.mxu0 0.0
    %531 = vmatpush1.msra.mxu0 %v160
    %532 = vmatprep.subr.mxu0 0.0
    %533 = vmatpush1.msra.mxu0 %v161
    %534 = vmatprep.subr.mxu0 0.0
    %535 = vmatpush1.msra.mxu0 0.0
    %536 = vmatprep.subr.mxu0 0.0
    %537 = vmatpush1.msra.mxu0 0.0
    %538 = vmatprep.subr.mxu0 0.0
    %539 = vmatpush1.msra.mxu0 0.0
    %540 = vmatprep.subr.mxu0 0.0
    %541 = vmatpush1.msra.mxu0 0.0
    %542 = vmatprep.subr.mxu0 0.0
    %543 = vmatpush1.msra.mxu0 0.0
    %544 = vmatprep.subr.mxu0 0.0
    %545 = vmatpush1.msra.mxu0 0.0
    %546 = vmatprep.subr.mxu0 0.0
    %547 = vmatpush1.msra.mxu0 0.0
    %548 = vmatprep.subr.mxu0 0.0
    %549 = vmatpush1.msra.mxu0 0.0
    %550 = vmatprep.subr.mxu0 0.0
    %551 = vmatpush1.msra.mxu0 0.0
    %552 = vmatprep.subr.mxu0 0.0
    %553 = vmatpush1.msra.mxu0 0.0
    %554 = vmatprep.subr.mxu0 0.0
    %555 = vmatpush1.msra.mxu0 0.0
    %556 = vmatprep.subr.mxu0 0.0
    %557 = vmatpush1.msra.mxu0 0.0
    %558 = vmatprep.subr.mxu0 0.0
    %559 = vmatpush1.msra.mxu0 0.0
    %560 = vmatprep.subr.mxu0 0.0
    %561 = vmatpush1.msra.mxu0 0.0
    %562 = vmatprep.subr.mxu0 0.0
    %563 = vmatpush1.msra.mxu0 0.0
    %564 = vmatprep.subr.mxu0 0.0
    %565 = vmatpush1.msra.mxu0 0.0
    %566 = vmatprep.mubr.f32.mxu0 0.0
    %567 = vmatmul.mubr.f32.gmra.mrb[0].mxu0 %v212
    %v568 = vpop.f32.mrb[0].mxu0
    %v569 = vadd.f32 %v499, %v568
    %v570 = vpop.f32.mrb[0].mxu0
    %571 = vdwg.mxu0
    %vm572 = vcmask 1041408
    %v573 = vsel %vm572, %v569, -inf
    %574 = vmax.xlane.f32.xlu0 %v573
    %v575 = vpop.xlane.xlu0 %574
    %v576 = vsub.f32 %v569, %v575
    %v577 = vmul.f32 %v576, 1.442695
    %v578 = vpow.pop %v577
    %v579 = vsel %vm572, %v578, 0.0
    %580 = vadd.xlane.f32.xlu0 %v579
    %v581 = vpop.xlane.xlu0 %580
    %v582 = vlog2.pop %v581
    %v583 = vmul.f32 %v582, 0.6931472
    %v584 = vsub.f32 %v576, %v583
    %585 = vst [vmem:[#allocation2] sm:$0x3] %v584
    // Predicated region
    $region14: #{classifier_forward.1} parent=1 // pred_check
      _
    $region15: #{classifier_forward.1} parent=1 // pred_check_branch
      %587 = sbr.rel (0) target = $region17
    $region16: #{classifier_forward.1} parent=1 // pred_region
      %s589 = ssub.s32 32, 32
      %590 = vsyncadd [#allocation3], %s589
      %s592 = sshll.u32 [#allocation2], 4
      %s593 = int_to_ptr.vmem [resolvable:$true] %s592
      %595 = dma.vmem_to_hbm [thread:$0]  %s593, 32, %s3, [#allocation3]
    $region17: #{classifier_forward.1} parent=1 // pred_fallthru
      _
    // Predicated region
    $region18: #{classifier_forward.1} parent=1 // pred_check
      _
    $region19: #{classifier_forward.1} parent=1 // pred_check_branch
      %597 = sbr.rel (0) target = $region21
    $region20: #{classifier_forward.1} parent=1 // pred_region
      %598 = dma.done [#allocation3], 32
    $region21: #{classifier_forward.1} parent=1 // pred_fallthru
      _
    %599 = vsyncpa [#allocation3], 1

</llo_original>
